<compile_context>
chip_gen: v7x
topology: tpu7x:2x2x1
jax: 0.10.0
libtpu: 0.0.40
codegen_flags: <defaults>
</compile_context>

<pallas_src>
import functools

import jax
import jax.numpy as jnp
from jax import lax
from jax.experimental import pallas as pl
from jax.experimental.pallas import tpu as pltpu


def _cse_kernel(x_ref, wsq_ref, wex_ref, o_ref, *, inv_hw):
    """Whole batch in one step: x_ref [B, C, HWp] -> o_ref [B, C, HWp]."""
    f32 = jnp.float32

    x = x_ref[...]                                             # [B, C, HWp] lane-dense tile

    # AdaptiveAvgPool2d(1): sum over the spatial (lane) axis, f32 accumulation.
    # Zero padding of the lane dim does not perturb the sum; scale by 1/true_HW.
    pooled = jnp.sum(x, axis=2, dtype=f32) * inv_hw            # [B, C]

    wsq = wsq_ref[...].astype(f32)                             # [C//2, C]
    wex = wex_ref[...].astype(f32)                             # [C, C//2]

    # Conv_Squeeze (1x1, bias=False): VPU multiply + lane reduce (off the MXU),
    # then ReLU.  hidden[b, o] = sum_c wsq[o, c] * pooled[b, c]
    hidden = jnp.sum(wsq[None, :, :] * pooled[:, None, :], axis=2)   # [B, C//2]
    hidden = jnp.maximum(hidden, 0.0)

    # Conv_Excitation (1x1, bias=False): z[b, c] = sum_o wex[c, o] * hidden[b, o]
    z = jnp.sum(wex[None, :, :] * hidden[:, None, :], axis=2)        # [B, C]

    # Sigmoid gate (EUP exp) and broadcast scale over all H*W lanes.
    gate = 1.0 / (1.0 + jnp.exp(-z))                                 # [B, C] f32
    o_ref[...] = (x * gate[:, :, None]).astype(o_ref.dtype)


def cse_forward(x, w_squeeze, w_excite):
    """x: [B, C, H, W]; w_squeeze: [C//2, C, 1, 1]; w_excite: [C, C//2, 1, 1]."""
    B, C, H, W = x.shape
    HW = H * W
    wsq = w_squeeze.reshape(C // 2, C)
    wex = w_excite.reshape(C, C // 2)

    # Keep the lane (last) dim a multiple of 128 for unmasked vector stores.
    HWp = ((HW + 127) // 128) * 128
    x2d = x.reshape(B, C, HW)                                  # layout glue only
    if HWp != HW:
        x2d = jnp.pad(x2d, ((0, 0), (0, 0), (0, HWp - HW)))

    kernel = functools.partial(_cse_kernel, inv_hw=1.0 / HW)

    out = pl.pallas_call(
        kernel,
        out_shape=jax.ShapeDtypeStruct((B, C, HWp), x.dtype),
        grid=(1,),                                             # whole batch in one step
        in_specs=[
            pl.BlockSpec((B, C, HWp), lambda i: (0, 0, 0)),    # full activation block
            pl.BlockSpec((C // 2, C), lambda i: (0, 0)),       # squeeze weights
            pl.BlockSpec((C, C // 2), lambda i: (0, 0)),       # excitation weights
        ],
        out_specs=pl.BlockSpec((B, C, HWp), lambda i: (0, 0, 0)),
    )(x2d, wsq, wex)

    if HWp != HW:
        out = out[:, :, :HW]
    return out.reshape(B, C, H, W)


# ---------------- pure-JAX reference (mirrors the PyTorch forward) ----------------
def cse_reference(x, w_squeeze, w_excite):
    B, C, H, W = x.shape
    hp = lax.Precision.HIGHEST
    wsq = w_squeeze.reshape(C // 2, C)
    wex = w_excite.reshape(C, C // 2)
    z = jnp.mean(x, axis=(2, 3))                               # [B, C]
    z = jnp.einsum("bc,oc->bo", z, wsq, precision=hp)          # Conv_Squeeze
    z = jnp.maximum(z, 0.0)                                    # ReLU
    z = jnp.einsum("bo,co->bc", z, wex, precision=hp)          # Conv_Excitation
    z = jax.nn.sigmoid(z)                                      # norm
    return x * z[:, :, None, None]                             # x * z.expand_as(x)


if __name__ == "__main__":
    B, C, H, W = 2, 8, 16, 16                                  # in_ch=8 -> squeeze to 4
    key = jax.random.PRNGKey(0)
    kx, k1, k2 = jax.random.split(key, 3)
    x = jax.random.normal(kx, (B, C, H, W), jnp.float32)       # NCHW, like PyTorch
    # Conv2d weight shapes [out, in, 1, 1], kaiming-style scaling.
    w_squeeze = jax.random.normal(k1, (C // 2, C, 1, 1), jnp.float32) * (2.0 / C) ** 0.5
    w_excite = jax.random.normal(k2, (C, C // 2, 1, 1), jnp.float32) * (2.0 / (C // 2)) ** 0.5

    out = jax.block_until_ready(cse_forward(x, w_squeeze, w_excite))
    ref = jax.block_until_ready(cse_reference(x, w_squeeze, w_excite))

    assert out.shape == (B, C, H, W), out.shape
    err = float(jnp.max(jnp.abs(out - ref)))
    if not bool(jnp.allclose(out, ref, atol=1e-4, rtol=1e-4)):
        raise SystemExit(f"mismatch vs reference: max abs err = {err}")
    print("KERNEL_OK")
</pallas_src>

<mosaic_0001>
module attributes {stable_mosaic.version = 11 : i64} {
  func.func @_cse_kernel(%arg0: i32, %arg1: memref<2x8x256xf32, #tpu.memory_space<vmem>>, %arg2: memref<4x8xf32, #tpu.memory_space<vmem>>, %arg3: memref<8x4xf32, #tpu.memory_space<vmem>>, %arg4: memref<2x8x256xf32, #tpu.memory_space<vmem>>) attributes {dimension_semantics = [#tpu.dimension_semantics<arbitrary>], iteration_bounds = array<i64: 1>, scalar_prefetch = 0 : i64, scratch_operands = 0 : i64, tpu.core_type = #tpu.core_type<tc>, window_params = [{pipeline_mode = #tpu.pipeline_mode<synchronous>, transform_indices = @transform_0, window_bounds = array<i64: 2, 8, 256>}, {pipeline_mode = #tpu.pipeline_mode<synchronous>, transform_indices = @transform_1, window_bounds = array<i64: 4, 8>}, {pipeline_mode = #tpu.pipeline_mode<synchronous>, transform_indices = @transform_2, window_bounds = array<i64: 8, 4>}, {pipeline_mode = #tpu.pipeline_mode<synchronous>, transform_indices = @transform_3, window_bounds = array<i64: 2, 8, 256>}]} {
    %c0 = arith.constant 0 : index
    %c0_0 = arith.constant 0 : index
    %c0_1 = arith.constant 0 : index
    %0 = vector.load %arg1[%c0, %c0_0, %c0_1] : memref<2x8x256xf32, #tpu.memory_space<vmem>>, vector<2x8x256xf32>
    %cst = arith.constant dense<0.000000e+00> : vector<2x8xf32>
    %1 = vector.multi_reduction <add>, %0, %cst [2] : vector<2x8x256xf32> to vector<2x8xf32>
    %cst_2 = arith.constant 3.906250e-03 : f32
    %2 = vector.broadcast %cst_2 : f32 to vector<2x8xf32>
    %3 = arith.mulf %1, %2 : vector<2x8xf32>
    %c0_3 = arith.constant 0 : index
    %c0_4 = arith.constant 0 : index
    %4 = vector.load %arg2[%c0_3, %c0_4] : memref<4x8xf32, #tpu.memory_space<vmem>>, vector<4x8xf32>
    %c0_5 = arith.constant 0 : index
    %c0_6 = arith.constant 0 : index
    %5 = vector.load %arg3[%c0_5, %c0_6] : memref<8x4xf32, #tpu.memory_space<vmem>>, vector<8x4xf32>
    %6 = vector.shape_cast %4 : vector<4x8xf32> to vector<1x4x8xf32>
    %7 = vector.shape_cast %3 : vector<2x8xf32> to vector<2x1x8xf32>
    %8 = vector.broadcast %6 : vector<1x4x8xf32> to vector<2x4x8xf32>
    %9 = vector.broadcast %7 : vector<2x1x8xf32> to vector<2x4x8xf32>
    %10 = arith.mulf %8, %9 : vector<2x4x8xf32>
    %cst_7 = arith.constant dense<0.000000e+00> : vector<2x4xf32>
    %11 = vector.multi_reduction <add>, %10, %cst_7 [2] : vector<2x4x8xf32> to vector<2x4xf32>
    %cst_8 = arith.constant 0.000000e+00 : f32
    %12 = vector.broadcast %cst_8 : f32 to vector<2x4xf32>
    %13 = arith.maximumf %11, %12 : vector<2x4xf32>
    %14 = vector.shape_cast %5 : vector<8x4xf32> to vector<1x8x4xf32>
    %15 = vector.shape_cast %13 : vector<2x4xf32> to vector<2x1x4xf32>
    %16 = vector.broadcast %14 : vector<1x8x4xf32> to vector<2x8x4xf32>
    %17 = vector.broadcast %15 : vector<2x1x4xf32> to vector<2x8x4xf32>
    %18 = arith.mulf %16, %17 : vector<2x8x4xf32>
    %cst_9 = arith.constant dense<0.000000e+00> : vector<2x8xf32>
    %19 = vector.multi_reduction <add>, %18, %cst_9 [2] : vector<2x8x4xf32> to vector<2x8xf32>
    %cst_10 = arith.constant 0.000000e+00 : f32
    %20 = vector.broadcast %cst_10 : f32 to vector<2x8xf32>
    %21 = arith.subf %20, %19 : vector<2x8xf32>
    %22 = math.exp %21 : vector<2x8xf32>
    %cst_11 = arith.constant 1.000000e+00 : f32
    %23 = vector.broadcast %cst_11 : f32 to vector<2x8xf32>
    %24 = arith.addf %23, %22 : vector<2x8xf32>
    %cst_12 = arith.constant 1.000000e+00 : f32
    %25 = vector.broadcast %cst_12 : f32 to vector<2x8xf32>
    %26 = arith.divf %25, %24 : vector<2x8xf32>
    %27 = vector.shape_cast %26 : vector<2x8xf32> to vector<2x8x1xf32>
    %28 = vector.broadcast %27 : vector<2x8x1xf32> to vector<2x8x256xf32>
    %29 = arith.mulf %0, %28 : vector<2x8x256xf32>
    %c0_13 = arith.constant 0 : index
    %c0_14 = arith.constant 0 : index
    %c0_15 = arith.constant 0 : index
    %30 = vector.load %arg4[%c0_13, %c0_14, %c0_15] : memref<2x8x256xf32, #tpu.memory_space<vmem>>, vector<2x8x256xf32>
    tpu.vector_store %arg4[%c0_13, %c0_14, %c0_15], %29 {strides = array<i32>} : memref<2x8x256xf32, #tpu.memory_space<vmem>>, vector<2x8x256xf32>,
    return
  }
  func.func @transform_0(%arg0: i32) -> (i32, i32, i32) {
    %c0_i32 = arith.constant 0 : i32
    %c0_i32_0 = arith.constant 0 : i32
    %c0_i32_1 = arith.constant 0 : i32
    %c0_i32_2 = arith.constant 0 : i32
    return %c0_i32, %c0_i32_0, %c0_i32_1 : i32, i32, i32
  }
  func.func @transform_1(%arg0: i32) -> (i32, i32) {
    %c0_i32 = arith.constant 0 : i32
    %c0_i32_0 = arith.constant 0 : i32
    %c0_i32_1 = arith.constant 0 : i32
    return %c0_i32, %c0_i32_0 : i32, i32
  }
  func.func @transform_2(%arg0: i32) -> (i32, i32) {
    %c0_i32 = arith.constant 0 : i32
    %c0_i32_0 = arith.constant 0 : i32
    %c0_i32_1 = arith.constant 0 : i32
    return %c0_i32, %c0_i32_0 : i32, i32
  }
  func.func @transform_3(%arg0: i32) -> (i32, i32, i32) {
    %c0_i32 = arith.constant 0 : i32
    %c0_i32_0 = arith.constant 0 : i32
    %c0_i32_1 = arith.constant 0 : i32
    %c0_i32_2 = arith.constant 0 : i32
    return %c0_i32, %c0_i32_0, %c0_i32_1 : i32, i32, i32
  }
}

</mosaic_0001>

<llo_original>
// kernel: tpu_custom_call.1
$region0: #{tpu_custom_call.1}
  #allocation0 [shape = 'u32[]', space=smem, size = 0x4, offset = 0x4, fixed_abs, tag = 'smem constant byte address 0x4 - core index']
  #allocation1 [shape = 'u32[144,128]{1,0:T(1,128)}', space=vmem, size = 0x12000, scoped, tag = 'internal scratch']
  %s0 = inlined_call_operand.hbm [shape: f32[2,8,256], index: 0, kind: input, shape index: {}]
  %s1 = inlined_call_operand.vmem [shape: f32[4,8], index: 1, kind: input, shape index: {}]
  %s2 = inlined_call_operand.vmem [shape: f32[8,4], index: 2, kind: input, shape index: {}]
  %s3 = inlined_call_operand.hbm [shape: f32[2,8,256], index: 3, kind: output, shape index: {}]
  %s4 = sld [smem:[#allocation0]]
  $region26: #{tpu_custom_call.1} parent=0
    _
  %s6 = ssub.s32 1, %s4
  %s7 = scalar_select 0, %s6, %s4
  $region1: #{tpu_custom_call.1} parent=0
    #allocation2 [shape = 'u8[16384]{0}', space=vmem, size = 0x4000, scoped, tag = 'input window, operand 0, single buffered']
    #allocation3 [shape = 's32[1]{0}', space=sflag, size = 0x4, scoped, tag = 'scoped memory for tpu_custom_call.1']
    #allocation4 [shape = 's32[1]{0}', space=sflag, size = 0x4, scoped, tag = 'scoped memory for tpu_custom_call.1']
    #allocation5 [shape = 'u8[16384]{0}', space=vmem, size = 0x4000, scoped, tag = 'output window, operand 0, single buffered']
    %8 = vsyncpa [#allocation3], 0
    %9 = vsyncpa [#allocation4], 0
    // Predicated region
    $region2: #{tpu_custom_call.1} parent=1 // pred_check
      _
    $region3: #{tpu_custom_call.1} parent=1 // pred_check_branch
      %11 = sbr.rel (0) target = $region5
    $region4: #{tpu_custom_call.1} parent=1 // pred_region
      %s13 = ssub.s32 512, 512
      %14 = vsyncadd [#allocation3], %s13
      %s15 = sshll.u32 [#allocation2], 4
      %s16 = int_to_ptr.vmem [resolvable:$true] %s15
      %21 = dma.hbm_to_vmem [thread:$0]  %s0, 512, %s16, [#allocation3], 256, 256, 16
    $region5: #{tpu_custom_call.1} parent=1 // pred_fallthru
      _
    // Predicated region
    $region6: #{tpu_custom_call.1} parent=1 // pred_check
      _
    $region7: #{tpu_custom_call.1} parent=1 // pred_check_branch
      %23 = sbr.rel (0) target = $region9
    $region8: #{tpu_custom_call.1} parent=1 // pred_region
      _
    $region9: #{tpu_custom_call.1} parent=1 // pred_fallthru
      _
    // Predicated region
    $region10: #{tpu_custom_call.1} parent=1 // pred_check
      _
    $region11: #{tpu_custom_call.1} parent=1 // pred_check_branch
      %25 = sbr.rel (0) target = $region13
    $region12: #{tpu_custom_call.1} parent=1 // pred_region
      _
    $region13: #{tpu_custom_call.1} parent=1 // pred_fallthru
      _
    // Predicated region
    $region14: #{tpu_custom_call.1} parent=1 // pred_check
      _
    $region15: #{tpu_custom_call.1} parent=1 // pred_check_branch
      %27 = sbr.rel (0) target = $region17
    $region16: #{tpu_custom_call.1} parent=1 // pred_region
      %28 = dma.done [#allocation3], 512
    $region17: #{tpu_custom_call.1} parent=1 // pred_fallthru
      _
    %v29 = vld [vmem:[#allocation2] sm:$0xff]
    %v30 = vld [vmem:[#allocation2 + $0x8] sm:$0xff]
    %v31 = vld [vmem:[#allocation2 + $0x10] sm:$0xff]
    %v32 = vld [vmem:[#allocation2 + $0x18] sm:$0xff]
    %v33 = vadd.f32 %v29, %v30
    %34 = vadd.xlane.f32.xlu0 %v33
    %v35 = vpop.xlane.xlu0 %34
    %v36 = vadd.f32 %v31, %v32
    %37 = vadd.xlane.f32.xlu0 %v36
    %v38 = vpop.xlane.xlu0 %37
    %v39 = vmul.f32 %v35, 0.00390625
    %v40 = vmul.f32 %v38, 0.00390625
    %v41 = vld [vmem:[%s1] sm:$0xf]
    %v42 = vld [vmem:[%s2] sm:$0xff]
    %v45 = vlaneseq
    %v46 = vand.u32 %v45, 127
    %v47 = vlaneseq
    %v48 = vshrl.u32 %v47, 7
    %v49 = vsub.s32 %v46, %v48
    %v50 = vrot.slane %v39, %v49
    %v51 = vlaneseq
    %v52 = vshrl.u32 %v51, 7
    %v53 = vsub.s32 %v46, %v52
    %v54 = vrot.slane %v40, %v53
    %vm55 = vcmask 1042434
    %v56 = vsel %vm55, %v50, %v50
    %vm57 = vcmask 1043459
    %v58 = vsel %vm57, %v50, %v56
    %v59 = vsel %vm55, %v54, %v54
    %v60 = vsel %vm57, %v54, %v59
    %v63 = vmul.f32 %v41, %v58
    %v64 = vmul.f32 %v41, %v60
    %vm65 = vcmask 60416
    %v66 = vsel %vm65, %v63, 0.0
    %67 = vadd.xlane.f32.xlu0 %v66
    %v68 = vpop.xlane.xlu0 %67
    %v69 = vsel %vm65, %v64, 0.0
    %70 = vadd.xlane.f32.xlu0 %v69
    %v71 = vpop.xlane.xlu0 %70
    %v72 = vmax.f32 %v68, 0.0
    %v73 = vmax.f32 %v71, 0.0
    %v76 = vlaneseq
    %v77 = vshrl.u32 %v76, 7
    %v78 = vsub.s32 %v46, %v77
    %v79 = vrot.slane %v72, %v78
    %v80 = vlaneseq
    %v81 = vshrl.u32 %v80, 7
    %v82 = vsub.s32 %v46, %v81
    %v83 = vrot.slane %v73, %v82
    %v84 = vsel %vm55, %v79, %v79
    %v85 = vsel %vm57, %v79, %v84
    %vm86 = vcmask 1044484
    %v87 = vsel %vm86, %v79, %v85
    %vm88 = vcmask 1045509
    %v89 = vsel %vm88, %v79, %v87
    %vm90 = vcmask 1046534
    %v91 = vsel %vm90, %v79, %v89
    %vm92 = vcmask 1047559
    %v93 = vsel %vm92, %v79, %v91
    %v94 = vsel %vm55, %v83, %v83
    %v95 = vsel %vm57, %v83, %v94
    %v96 = vsel %vm86, %v83, %v95
    %v97 = vsel %vm88, %v83, %v96
    %v98 = vsel %vm90, %v83, %v97
    %v99 = vsel %vm92, %v83, %v98
    %v102 = vmul.f32 %v42, %v93
    %v103 = vmul.f32 %v42, %v99
    %vm104 = vcmask 31744
    %v105 = vsel %vm104, %v102, 0.0
    %106 = vadd.xlane.f32.xlu0 %v105
    %v107 = vpop.xlane.xlu0 %106
    %v108 = vsel %vm104, %v103, 0.0
    %109 = vadd.xlane.f32.xlu0 %v108
    %v110 = vpop.xlane.xlu0 %109
    %v111 = vsub.f32 0.0, %v107
    %v112 = vsub.f32 0.0, %v110
    %v113 = vmul.f32 %v111, 1.442695
    %v114 = vpow.pop %v113
    %v115 = vmul.f32 %v112, 1.442695
    %v116 = vpow.pop %v115
    %v117 = vadd.f32 %v114, 1.0
    %v118 = vadd.f32 %v116, 1.0
    %v119 = vrcp.pop %v117
    %v120 = vmul.f32 1.0, %v119
    %v121 = vrcp.pop %v118
    %v122 = vmul.f32 1.0, %v121
    %v123 = vmul.f32 %v29, %v120
    %v124 = vmul.f32 %v30, %v120
    %v125 = vmul.f32 %v31, %v122
    %v126 = vmul.f32 %v32, %v122
    %127 = vst [vmem:[#allocation5] sm:$0xff] %v123
    %128 = vst [vmem:[#allocation5 + $0x8] sm:$0xff] %v124
    %129 = vst [vmem:[#allocation5 + $0x10] sm:$0xff] %v125
    %130 = vst [vmem:[#allocation5 + $0x18] sm:$0xff] %v126
    // Predicated region
    $region18: #{tpu_custom_call.1} parent=1 // pred_check
      _
    $region19: #{tpu_custom_call.1} parent=1 // pred_check_branch
      %132 = sbr.rel (0) target = $region21
    $region20: #{tpu_custom_call.1} parent=1 // pred_region
      %s134 = ssub.s32 512, 512
      %135 = vsyncadd [#allocation4], %s134
      %s136 = sshll.u32 [#allocation5], 4
      %s137 = int_to_ptr.vmem [resolvable:$true] %s136
      %142 = dma.vmem_to_hbm [thread:$0]  %s137, 512, %s3, [#allocation4], 256, 256, 16
    $region21: #{tpu_custom_call.1} parent=1 // pred_fallthru
      _
    // Predicated region
    $region22: #{tpu_custom_call.1} parent=1 // pred_check
      _
    $region23: #{tpu_custom_call.1} parent=1 // pred_check_branch
      %144 = sbr.rel (0) target = $region25
    $region24: #{tpu_custom_call.1} parent=1 // pred_region
      %145 = dma.done [#allocation4], 512
    $region25: #{tpu_custom_call.1} parent=1 // pred_fallthru
      _
    %146 = vsyncpa [#allocation3], 1
    %147 = vsyncpa [#allocation4], 1

</llo_original>
